<compile_context>
chip_gen: v7x
topology: tpu7x:2x2x1
jax: 0.10.0
libtpu: 0.0.40
codegen_flags: <defaults>
</compile_context>

<pallas_src>
import jax
import jax.numpy as jnp
from jax.experimental import pallas as pl
from jax.experimental.pallas import tpu as pltpu


def _lstm_fc_kernel(x_ref, w_ih_ref, w_hh_ref, b_ref, w_fc_ref, b_fc_ref,
                    out_ref):
    """Whole sequence in one invocation.

    x_ref:    (T*Bp, D)  time-major flattened input (rows t*Bp .. t*Bp+Bp-1
                         are timestep t; Bp is the 8-padded batch)
    w_ih_ref: (D, 4H)    W_ih^T
    w_hh_ref: (H, 4H)    W_hh^T
    b_ref:    (1, 4H)    b_ih + b_hh
    w_fc_ref: (H, O)     W_fc^T
    b_fc_ref: (1, O)
    out_ref:  (Bp, O)
    """
    Bp = out_ref.shape[0]
    H = w_hh_ref.shape[0]
    G = 4 * H
    T = x_ref.shape[0] // Bp

    # (1) Hoisted input projection: one wide MXU matmul for ALL timesteps,
    #     removed from the serial dependency chain.  Kept as a traced value
    #     (vreg / compiler-managed VMEM), not a scratch buffer.
    gx = (jnp.dot(x_ref[...], w_ih_ref[...],
                  preferred_element_type=jnp.float32)
          + b_ref[...])                                     # (T*Bp, 4H)

    # Recurrent weight, loaded from VMEM exactly once.
    w_hh = w_hh_ref[...]                                    # (H, 4H)

    # Lane masks for the activation trick (hoisted out of the loop):
    #   sigmoid(x) = 0.5 * (1 + tanh(x / 2))
    # g-gate lanes [2H, 3H) keep plain tanh; all other lanes get the
    # pre-scale-by-0.5 / post 0.5*t + 0.5 fix-up.  One EUP tanh per step.
    lane = jax.lax.broadcasted_iota(jnp.int32, (Bp, G), 1)
    is_g = (lane >= 2 * H) & (lane < 3 * H)
    scale = jnp.where(is_g, 1.0, 0.5).astype(jnp.float32)   # pre & post scale
    shift = jnp.where(is_g, 0.0, 0.5).astype(jnp.float32)   # post bias

    h = jnp.zeros((Bp, H), jnp.float32)
    c = jnp.zeros((Bp, H), jnp.float32)

    # T is small and static: plain Python unroll => every slice below is a
    # compile-time-constant, sublane-aligned (Bp = 8) index.
    for t in range(T):
        gates = gx[t * Bp:(t + 1) * Bp, :] + jnp.dot(
            h, w_hh, preferred_element_type=jnp.float32)     # (Bp, 4H)

        # Single full-width tanh pass (EUP) + cheap VPU fix-up.
        th = jnp.tanh(gates * scale)
        act = th * scale + shift

        i_g = act[:, 0 * H:1 * H]
        f_g = act[:, 1 * H:2 * H]
        g_g = act[:, 2 * H:3 * H]
        o_g = act[:, 3 * H:4 * H]

        c = f_g * c + i_g * g_g
        h = o_g * jnp.tanh(c)

    # Final FC on the last hidden state (runs once; O is tiny, so the narrow
    # matmul/store is negligible).
    out_ref[...] = (jnp.dot(h, w_fc_ref[...],
                            preferred_element_type=jnp.float32)
                    + b_fc_ref[...]).astype(out_ref.dtype)


def prepare_airmodel_params(w_ih, w_hh, b_ih, b_hh, w_fc, b_fc):
    """One-time parameter preprocessing (keep OUT of the per-call jit path)."""
    H = w_hh.shape[1]
    O = w_fc.shape[0]
    return (jnp.transpose(w_ih),                    # (D, 4H)  = W_ih^T
            jnp.transpose(w_hh),                    # (H, 4H)  = W_hh^T
            (b_ih + b_hh).reshape(1, 4 * H),        # (1, 4H)
            jnp.transpose(w_fc),                    # (H, O)   = W_fc^T
            b_fc.reshape(1, O))                     # (1, O)


@jax.jit
def airmodel_forward(x, params):
    """x: (B, T, D) float32 (batch_first, like the PyTorch module).
    params: output of prepare_airmodel_params."""
    w_ih_t, w_hh_t, b, w_fc_t, b_fc2 = params
    B, T, D = x.shape
    O = w_fc_t.shape[1]

    # Pad batch to the f32 sublane granule (8) so every tile/slice is aligned
    # and the output store is unmasked; padded rows are discarded below.
    Bp = ((B + 7) // 8) * 8

    # Time-major flatten so the hoisted projection is one contiguous matmul
    # and each timestep occupies exactly Bp consecutive (aligned) rows.
    x_tm = jnp.transpose(x, (1, 0, 2))               # (T, B, D)
    if Bp != B:
        x_tm = jnp.pad(x_tm, ((0, 0), (0, Bp - B), (0, 0)))
    x2d = x_tm.reshape(T * Bp, D)                    # (T*Bp, D)

    vmem = pltpu.MemorySpace.VMEM
    out_p = pl.pallas_call(
        _lstm_fc_kernel,
        out_shape=jax.ShapeDtypeStruct((Bp, O), jnp.float32),
        in_specs=[
            pl.BlockSpec(memory_space=vmem),   # x (T*Bp, D)
            pl.BlockSpec(memory_space=vmem),   # W_ih^T
            pl.BlockSpec(memory_space=vmem),   # W_hh^T
            pl.BlockSpec(memory_space=vmem),   # fused bias
            pl.BlockSpec(memory_space=vmem),   # W_fc^T
            pl.BlockSpec(memory_space=vmem),   # b_fc
        ],
        out_specs=pl.BlockSpec(memory_space=vmem),
    )(x2d, w_ih_t, w_hh_t, b, w_fc_t, b_fc2)

    return out_p[:B]


def _reference_forward(x, w_ih, w_hh, b_ih, b_hh, w_fc, b_fc):
    """Pure-JAX reference mirroring torch.nn.LSTM (gate order i, f, g, o)."""
    B, T, D = x.shape
    H = w_hh.shape[1]
    h = jnp.zeros((B, H), jnp.float32)
    c = jnp.zeros((B, H), jnp.float32)
    for t in range(T):
        gates = x[:, t, :] @ w_ih.T + h @ w_hh.T + b_ih + b_hh
        i = jax.nn.sigmoid(gates[:, 0 * H:1 * H])
        f = jax.nn.sigmoid(gates[:, 1 * H:2 * H])
        g = jnp.tanh(gates[:, 2 * H:3 * H])
        o = jax.nn.sigmoid(gates[:, 3 * H:4 * H])
        c = f * c + i * g
        h = o * jnp.tanh(c)
    return h @ w_fc.T + b_fc


if __name__ == "__main__":
    # Small shapes consistent with the module's forward:
    #   x: (batch=2, seq=8, input_size=4), hidden_size=32, output_size=1
    B, T, D, H, O = 2, 8, 4, 32, 1

    key = jax.random.PRNGKey(0)
    kx, k1, k2, k3, k4, k5, k6 = jax.random.split(key, 7)
    bound = 1.0 / jnp.sqrt(H)   # PyTorch LSTM/Linear default uniform bound

    x = jax.random.normal(kx, (B, T, D), dtype=jnp.float32)
    w_ih = jax.random.uniform(k1, (4 * H, D), jnp.float32, -bound, bound)
    w_hh = jax.random.uniform(k2, (4 * H, H), jnp.float32, -bound, bound)
    b_ih = jax.random.uniform(k3, (4 * H,), jnp.float32, -bound, bound)
    b_hh = jax.random.uniform(k4, (4 * H,), jnp.float32, -bound, bound)
    w_fc = jax.random.uniform(k5, (O, H), jnp.float32, -bound, bound)
    b_fc = jax.random.uniform(k6, (O,), jnp.float32, -bound, bound)

    params = prepare_airmodel_params(w_ih, w_hh, b_ih, b_hh, w_fc, b_fc)

    out = airmodel_forward(x, params)
    out = jax.block_until_ready(out)

    ref = _reference_forward(x, w_ih, w_hh, b_ih, b_hh, w_fc, b_fc)
    assert out.shape == (B, O), out.shape
    assert jnp.allclose(out, ref, rtol=1e-4, atol=1e-4), (out, ref)

    print("KERNEL_OK")
</pallas_src>

<mosaic_0001>
module attributes {stable_mosaic.version = 11 : i64} {
  func.func @_lstm_fc_kernel(%arg0: memref<64x4xf32, #tpu.memory_space<vmem>>, %arg1: memref<4x128xf32, #tpu.memory_space<vmem>>, %arg2: memref<32x128xf32, #tpu.memory_space<vmem>>, %arg3: memref<1x128xf32, #tpu.memory_space<vmem>>, %arg4: memref<32x1xf32, #tpu.memory_space<vmem>>, %arg5: memref<1x1xf32, #tpu.memory_space<vmem>>, %arg6: memref<8x1xf32, #tpu.memory_space<vmem>>) attributes {dimension_semantics = [], scalar_prefetch = 0 : i64, scratch_operands = 0 : i64, tpu.core_type = #tpu.core_type<tc>} {
    %c0 = arith.constant 0 : index
    %c0_0 = arith.constant 0 : index
    %0 = vector.load %arg0[%c0, %c0_0] : memref<64x4xf32, #tpu.memory_space<vmem>>, vector<64x4xf32>
    %c0_1 = arith.constant 0 : index
    %c0_2 = arith.constant 0 : index
    %1 = vector.load %arg1[%c0_1, %c0_2] : memref<4x128xf32, #tpu.memory_space<vmem>>, vector<4x128xf32>
    %cst = arith.constant dense<0.000000e+00> : vector<64x128xf32>
    %2 = tpu.matmul %0, %1, %cst {dimension_numbers = #tpu.dot_dimension_numbers<[1], [0], [0], [1], [0, 0, 1, 1], [], []>} : vector<64x4xf32>, vector<4x128xf32>, vector<64x128xf32> -> vector<64x128xf32>
    %c0_3 = arith.constant 0 : index
    %c0_4 = arith.constant 0 : index
    %3 = vector.load %arg3[%c0_3, %c0_4] : memref<1x128xf32, #tpu.memory_space<vmem>>, vector<1x128xf32>
    %4 = vector.broadcast %3 : vector<1x128xf32> to vector<64x128xf32>
    %5 = arith.addf %2, %4 : vector<64x128xf32>
    %c0_5 = arith.constant 0 : index
    %c0_6 = arith.constant 0 : index
    %6 = vector.load %arg2[%c0_5, %c0_6] : memref<32x128xf32, #tpu.memory_space<vmem>>, vector<32x128xf32>
    %7 = tpu.iota {dimensions = array<i32: 1>} : vector<8x128xi32>
    %c64_i32 = arith.constant 64 : i32
    %8 = vector.broadcast %c64_i32 : i32 to vector<8x128xi32>
    %9 = arith.cmpi sge, %7, %8 : vector<8x128xi32>
    %c96_i32 = arith.constant 96 : i32
    %10 = vector.broadcast %c96_i32 : i32 to vector<8x128xi32>
    %11 = arith.cmpi slt, %7, %10 : vector<8x128xi32>
    %12 = arith.andi %9, %11 : vector<8x128xi1>
    %cst_7 = arith.constant 1.000000e+00 : f32
    %cst_8 = arith.constant 5.000000e-01 : f32
    %13 = vector.broadcast %cst_7 : f32 to vector<8x128xf32>
    %14 = vector.broadcast %cst_8 : f32 to vector<8x128xf32>
    %15 = arith.select %12, %13, %14 : vector<8x128xi1>, vector<8x128xf32>
    %cst_9 = arith.constant 0.000000e+00 : f32
    %cst_10 = arith.constant 5.000000e-01 : f32
    %16 = vector.broadcast %cst_9 : f32 to vector<8x128xf32>
    %17 = vector.broadcast %cst_10 : f32 to vector<8x128xf32>
    %18 = arith.select %12, %16, %17 : vector<8x128xi1>, vector<8x128xf32>
    %cst_11 = arith.constant 0.000000e+00 : f32
    %19 = vector.broadcast %cst_11 : f32 to vector<8x32xf32>
    %cst_12 = arith.constant 0.000000e+00 : f32
    %20 = vector.broadcast %cst_12 : f32 to vector<8x32xf32>
    %21 = vector.extract_strided_slice %5 {offsets = [0, 0], sizes = [8, 128], strides = [1, 1]} : vector<64x128xf32> to vector<8x128xf32>
    %cst_13 = arith.constant dense<0.000000e+00> : vector<8x128xf32>
    %22 = tpu.matmul %19, %6, %cst_13 {dimension_numbers = #tpu.dot_dimension_numbers<[1], [0], [0], [1], [0, 0, 1, 1], [], []>} : vector<8x32xf32>, vector<32x128xf32>, vector<8x128xf32> -> vector<8x128xf32>
    %23 = arith.addf %21, %22 : vector<8x128xf32>
    %24 = arith.mulf %23, %15 : vector<8x128xf32>
    %25 = math.tanh %24 : vector<8x128xf32>
    %26 = arith.mulf %25, %15 : vector<8x128xf32>
    %27 = arith.addf %26, %18 : vector<8x128xf32>
    %28 = vector.extract_strided_slice %27 {offsets = [0, 0], sizes = [8, 32], strides = [1, 1]} : vector<8x128xf32> to vector<8x32xf32>
    %29 = vector.extract_strided_slice %27 {offsets = [0, 32], sizes = [8, 32], strides = [1, 1]} : vector<8x128xf32> to vector<8x32xf32>
    %30 = vector.extract_strided_slice %27 {offsets = [0, 64], sizes = [8, 32], strides = [1, 1]} : vector<8x128xf32> to vector<8x32xf32>
    %31 = vector.extract_strided_slice %27 {offsets = [0, 96], sizes = [8, 32], strides = [1, 1]} : vector<8x128xf32> to vector<8x32xf32>
    %32 = arith.mulf %29, %20 : vector<8x32xf32>
    %33 = arith.mulf %28, %30 : vector<8x32xf32>
    %34 = arith.addf %32, %33 : vector<8x32xf32>
    %35 = math.tanh %34 : vector<8x32xf32>
    %36 = arith.mulf %31, %35 : vector<8x32xf32>
    %37 = vector.extract_strided_slice %5 {offsets = [8, 0], sizes = [8, 128], strides = [1, 1]} : vector<64x128xf32> to vector<8x128xf32>
    %cst_14 = arith.constant dense<0.000000e+00> : vector<8x128xf32>
    %38 = tpu.matmul %36, %6, %cst_14 {dimension_numbers = #tpu.dot_dimension_numbers<[1], [0], [0], [1], [0, 0, 1, 1], [], []>} : vector<8x32xf32>, vector<32x128xf32>, vector<8x128xf32> -> vector<8x128xf32>
    %39 = arith.addf %37, %38 : vector<8x128xf32>
    %40 = arith.mulf %39, %15 : vector<8x128xf32>
    %41 = math.tanh %40 : vector<8x128xf32>
    %42 = arith.mulf %41, %15 : vector<8x128xf32>
    %43 = arith.addf %42, %18 : vector<8x128xf32>
    %44 = vector.extract_strided_slice %43 {offsets = [0, 0], sizes = [8, 32], strides = [1, 1]} : vector<8x128xf32> to vector<8x32xf32>
    %45 = vector.extract_strided_slice %43 {offsets = [0, 32], sizes = [8, 32], strides = [1, 1]} : vector<8x128xf32> to vector<8x32xf32>
    %46 = vector.extract_strided_slice %43 {offsets = [0, 64], sizes = [8, 32], strides = [1, 1]} : vector<8x128xf32> to vector<8x32xf32>
    %47 = vector.extract_strided_slice %43 {offsets = [0, 96], sizes = [8, 32], strides = [1, 1]} : vector<8x128xf32> to vector<8x32xf32>
    %48 = arith.mulf %45, %34 : vector<8x32xf32>
    %49 = arith.mulf %44, %46 : vector<8x32xf32>
    %50 = arith.addf %48, %49 : vector<8x32xf32>
    %51 = math.tanh %50 : vector<8x32xf32>
    %52 = arith.mulf %47, %51 : vector<8x32xf32>
    %53 = vector.extract_strided_slice %5 {offsets = [16, 0], sizes = [8, 128], strides = [1, 1]} : vector<64x128xf32> to vector<8x128xf32>
    %cst_15 = arith.constant dense<0.000000e+00> : vector<8x128xf32>
    %54 = tpu.matmul %52, %6, %cst_15 {dimension_numbers = #tpu.dot_dimension_numbers<[1], [0], [0], [1], [0, 0, 1, 1], [], []>} : vector<8x32xf32>, vector<32x128xf32>, vector<8x128xf32> -> vector<8x128xf32>
    %55 = arith.addf %53, %54 : vector<8x128xf32>
    %56 = arith.mulf %55, %15 : vector<8x128xf32>
    %57 = math.tanh %56 : vector<8x128xf32>
    %58 = arith.mulf %57, %15 : vector<8x128xf32>
    %59 = arith.addf %58, %18 : vector<8x128xf32>
    %60 = vector.extract_strided_slice %59 {offsets = [0, 0], sizes = [8, 32], strides = [1, 1]} : vector<8x128xf32> to vector<8x32xf32>
    %61 = vector.extract_strided_slice %59 {offsets = [0, 32], sizes = [8, 32], strides = [1, 1]} : vector<8x128xf32> to vector<8x32xf32>
    %62 = vector.extract_strided_slice %59 {offsets = [0, 64], sizes = [8, 32], strides = [1, 1]} : vector<8x128xf32> to vector<8x32xf32>
    %63 = vector.extract_strided_slice %59 {offsets = [0, 96], sizes = [8, 32], strides = [1, 1]} : vector<8x128xf32> to vector<8x32xf32>
    %64 = arith.mulf %61, %50 : vector<8x32xf32>
    %65 = arith.mulf %60, %62 : vector<8x32xf32>
    %66 = arith.addf %64, %65 : vector<8x32xf32>
    %67 = math.tanh %66 : vector<8x32xf32>
    %68 = arith.mulf %63, %67 : vector<8x32xf32>
    %69 = vector.extract_strided_slice %5 {offsets = [24, 0], sizes = [8, 128], strides = [1, 1]} : vector<64x128xf32> to vector<8x128xf32>
    %cst_16 = arith.constant dense<0.000000e+00> : vector<8x128xf32>
    %70 = tpu.matmul %68, %6, %cst_16 {dimension_numbers = #tpu.dot_dimension_numbers<[1], [0], [0], [1], [0, 0, 1, 1], [], []>} : vector<8x32xf32>, vector<32x128xf32>, vector<8x128xf32> -> vector<8x128xf32>
    %71 = arith.addf %69, %70 : vector<8x128xf32>
    %72 = arith.mulf %71, %15 : vector<8x128xf32>
    %73 = math.tanh %72 : vector<8x128xf32>
    %74 = arith.mulf %73, %15 : vector<8x128xf32>
    %75 = arith.addf %74, %18 : vector<8x128xf32>
    %76 = vector.extract_strided_slice %75 {offsets = [0, 0], sizes = [8, 32], strides = [1, 1]} : vector<8x128xf32> to vector<8x32xf32>
    %77 = vector.extract_strided_slice %75 {offsets = [0, 32], sizes = [8, 32], strides = [1, 1]} : vector<8x128xf32> to vector<8x32xf32>
    %78 = vector.extract_strided_slice %75 {offsets = [0, 64], sizes = [8, 32], strides = [1, 1]} : vector<8x128xf32> to vector<8x32xf32>
    %79 = vector.extract_strided_slice %75 {offsets = [0, 96], sizes = [8, 32], strides = [1, 1]} : vector<8x128xf32> to vector<8x32xf32>
    %80 = arith.mulf %77, %66 : vector<8x32xf32>
    %81 = arith.mulf %76, %78 : vector<8x32xf32>
    %82 = arith.addf %80, %81 : vector<8x32xf32>
    %83 = math.tanh %82 : vector<8x32xf32>
    %84 = arith.mulf %79, %83 : vector<8x32xf32>
    %85 = vector.extract_strided_slice %5 {offsets = [32, 0], sizes = [8, 128], strides = [1, 1]} : vector<64x128xf32> to vector<8x128xf32>
    %cst_17 = arith.constant dense<0.000000e+00> : vector<8x128xf32>
    %86 = tpu.matmul %84, %6, %cst_17 {dimension_numbers = #tpu.dot_dimension_numbers<[1], [0], [0], [1], [0, 0, 1, 1], [], []>} : vector<8x32xf32>, vector<32x128xf32>, vector<8x128xf32> -> vector<8x128xf32>
    %87 = arith.addf %85, %86 : vector<8x128xf32>
    %88 = arith.mulf %87, %15 : vector<8x128xf32>
    %89 = math.tanh %88 : vector<8x128xf32>
    %90 = arith.mulf %89, %15 : vector<8x128xf32>
    %91 = arith.addf %90, %18 : vector<8x128xf32>
    %92 = vector.extract_strided_slice %91 {offsets = [0, 0], sizes = [8, 32], strides = [1, 1]} : vector<8x128xf32> to vector<8x32xf32>
    %93 = vector.extract_strided_slice %91 {offsets = [0, 32], sizes = [8, 32], strides = [1, 1]} : vector<8x128xf32> to vector<8x32xf32>
    %94 = vector.extract_strided_slice %91 {offsets = [0, 64], sizes = [8, 32], strides = [1, 1]} : vector<8x128xf32> to vector<8x32xf32>
    %95 = vector.extract_strided_slice %91 {offsets = [0, 96], sizes = [8, 32], strides = [1, 1]} : vector<8x128xf32> to vector<8x32xf32>
    %96 = arith.mulf %93, %82 : vector<8x32xf32>
    %97 = arith.mulf %92, %94 : vector<8x32xf32>
    %98 = arith.addf %96, %97 : vector<8x32xf32>
    %99 = math.tanh %98 : vector<8x32xf32>
    %100 = arith.mulf %95, %99 : vector<8x32xf32>
    %101 = vector.extract_strided_slice %5 {offsets = [40, 0], sizes = [8, 128], strides = [1, 1]} : vector<64x128xf32> to vector<8x128xf32>
    %cst_18 = arith.constant dense<0.000000e+00> : vector<8x128xf32>
    %102 = tpu.matmul %100, %6, %cst_18 {dimension_numbers = #tpu.dot_dimension_numbers<[1], [0], [0], [1], [0, 0, 1, 1], [], []>} : vector<8x32xf32>, vector<32x128xf32>, vector<8x128xf32> -> vector<8x128xf32>
    %103 = arith.addf %101, %102 : vector<8x128xf32>
    %104 = arith.mulf %103, %15 : vector<8x128xf32>
    %105 = math.tanh %104 : vector<8x128xf32>
    %106 = arith.mulf %105, %15 : vector<8x128xf32>
    %107 = arith.addf %106, %18 : vector<8x128xf32>
    %108 = vector.extract_strided_slice %107 {offsets = [0, 0], sizes = [8, 32], strides = [1, 1]} : vector<8x128xf32> to vector<8x32xf32>
    %109 = vector.extract_strided_slice %107 {offsets = [0, 32], sizes = [8, 32], strides = [1, 1]} : vector<8x128xf32> to vector<8x32xf32>
    %110 = vector.extract_strided_slice %107 {offsets = [0, 64], sizes = [8, 32], strides = [1, 1]} : vector<8x128xf32> to vector<8x32xf32>
    %111 = vector.extract_strided_slice %107 {offsets = [0, 96], sizes = [8, 32], strides = [1, 1]} : vector<8x128xf32> to vector<8x32xf32>
    %112 = arith.mulf %109, %98 : vector<8x32xf32>
    %113 = arith.mulf %108, %110 : vector<8x32xf32>
    %114 = arith.addf %112, %113 : vector<8x32xf32>
    %115 = math.tanh %114 : vector<8x32xf32>
    %116 = arith.mulf %111, %115 : vector<8x32xf32>
    %117 = vector.extract_strided_slice %5 {offsets = [48, 0], sizes = [8, 128], strides = [1, 1]} : vector<64x128xf32> to vector<8x128xf32>
    %cst_19 = arith.constant dense<0.000000e+00> : vector<8x128xf32>
    %118 = tpu.matmul %116, %6, %cst_19 {dimension_numbers = #tpu.dot_dimension_numbers<[1], [0], [0], [1], [0, 0, 1, 1], [], []>} : vector<8x32xf32>, vector<32x128xf32>, vector<8x128xf32> -> vector<8x128xf32>
    %119 = arith.addf %117, %118 : vector<8x128xf32>
    %120 = arith.mulf %119, %15 : vector<8x128xf32>
    %121 = math.tanh %120 : vector<8x128xf32>
    %122 = arith.mulf %121, %15 : vector<8x128xf32>
    %123 = arith.addf %122, %18 : vector<8x128xf32>
    %124 = vector.extract_strided_slice %123 {offsets = [0, 0], sizes = [8, 32], strides = [1, 1]} : vector<8x128xf32> to vector<8x32xf32>
    %125 = vector.extract_strided_slice %123 {offsets = [0, 32], sizes = [8, 32], strides = [1, 1]} : vector<8x128xf32> to vector<8x32xf32>
    %126 = vector.extract_strided_slice %123 {offsets = [0, 64], sizes = [8, 32], strides = [1, 1]} : vector<8x128xf32> to vector<8x32xf32>
    %127 = vector.extract_strided_slice %123 {offsets = [0, 96], sizes = [8, 32], strides = [1, 1]} : vector<8x128xf32> to vector<8x32xf32>
    %128 = arith.mulf %125, %114 : vector<8x32xf32>
    %129 = arith.mulf %124, %126 : vector<8x32xf32>
    %130 = arith.addf %128, %129 : vector<8x32xf32>
    %131 = math.tanh %130 : vector<8x32xf32>
    %132 = arith.mulf %127, %131 : vector<8x32xf32>
    %133 = vector.extract_strided_slice %5 {offsets = [56, 0], sizes = [8, 128], strides = [1, 1]} : vector<64x128xf32> to vector<8x128xf32>
    %cst_20 = arith.constant dense<0.000000e+00> : vector<8x128xf32>
    %134 = tpu.matmul %132, %6, %cst_20 {dimension_numbers = #tpu.dot_dimension_numbers<[1], [0], [0], [1], [0, 0, 1, 1], [], []>} : vector<8x32xf32>, vector<32x128xf32>, vector<8x128xf32> -> vector<8x128xf32>
    %135 = arith.addf %133, %134 : vector<8x128xf32>
    %136 = arith.mulf %135, %15 : vector<8x128xf32>
    %137 = math.tanh %136 : vector<8x128xf32>
    %138 = arith.mulf %137, %15 : vector<8x128xf32>
    %139 = arith.addf %138, %18 : vector<8x128xf32>
    %140 = vector.extract_strided_slice %139 {offsets = [0, 0], sizes = [8, 32], strides = [1, 1]} : vector<8x128xf32> to vector<8x32xf32>
    %141 = vector.extract_strided_slice %139 {offsets = [0, 32], sizes = [8, 32], strides = [1, 1]} : vector<8x128xf32> to vector<8x32xf32>
    %142 = vector.extract_strided_slice %139 {offsets = [0, 64], sizes = [8, 32], strides = [1, 1]} : vector<8x128xf32> to vector<8x32xf32>
    %143 = vector.extract_strided_slice %139 {offsets = [0, 96], sizes = [8, 32], strides = [1, 1]} : vector<8x128xf32> to vector<8x32xf32>
    %144 = arith.mulf %141, %130 : vector<8x32xf32>
    %145 = arith.mulf %140, %142 : vector<8x32xf32>
    %146 = arith.addf %144, %145 : vector<8x32xf32>
    %147 = math.tanh %146 : vector<8x32xf32>
    %148 = arith.mulf %143, %147 : vector<8x32xf32>
    %c0_21 = arith.constant 0 : index
    %c0_22 = arith.constant 0 : index
    %149 = vector.load %arg4[%c0_21, %c0_22] : memref<32x1xf32, #tpu.memory_space<vmem>>, vector<32x1xf32>
    %cst_23 = arith.constant dense<0.000000e+00> : vector<8x1xf32>
    %150 = tpu.matmul %148, %149, %cst_23 {dimension_numbers = #tpu.dot_dimension_numbers<[1], [0], [0], [1], [0, 0, 1, 1], [], []>} : vector<8x32xf32>, vector<32x1xf32>, vector<8x1xf32> -> vector<8x1xf32>
    %c0_24 = arith.constant 0 : index
    %c0_25 = arith.constant 0 : index
    %151 = vector.load %arg5[%c0_24, %c0_25] : memref<1x1xf32, #tpu.memory_space<vmem>>, vector<1x1xf32>
    %152 = vector.broadcast %151 : vector<1x1xf32> to vector<8x1xf32>
    %153 = arith.addf %150, %152 : vector<8x1xf32>
    %c0_26 = arith.constant 0 : index
    %c0_27 = arith.constant 0 : index
    %154 = vector.load %arg6[%c0_26, %c0_27] : memref<8x1xf32, #tpu.memory_space<vmem>>, vector<8x1xf32>
    tpu.vector_store %arg6[%c0_26, %c0_27], %153 {strides = array<i32>} : memref<8x1xf32, #tpu.memory_space<vmem>>, vector<8x1xf32>,
    return
  }
}

</mosaic_0001>

<llo_original>
// kernel: airmodel_forward.1
$region0: #{airmodel_forward.1}
  #allocation0 [shape = 'u32[]', space=smem, size = 0x4, offset = 0x4, fixed_abs, tag = 'smem constant byte address 0x4 - core index']
  #allocation1 [shape = 'u32[144,128]{1,0:T(1,128)}', space=vmem, size = 0x12000, scoped, tag = 'internal scratch']
  #allocation2 [shape = 'f32[1,1]{1,0:T(1,128)S(1)}', space=vmem, size = 0x200, scoped, tag = 'scoped memory for airmodel_forward.1']
  %s0 = inlined_call_operand.vmem [shape: f32[64,4], index: 0, kind: input, shape index: {}]
  %s1 = inlined_call_operand.vmem [shape: f32[4,128], index: 1, kind: input, shape index: {}]
  %s2 = inlined_call_operand.vmem [shape: f32[32,128], index: 2, kind: input, shape index: {}]
  %s3 = inlined_call_operand.vmem [shape: f32[1,128], index: 3, kind: input, shape index: {}]
  %s4 = inlined_call_operand.vmem [shape: f32[32,1], index: 4, kind: input, shape index: {}]
  %s5 = inlined_call_operand.<no memory space> [shape: f32[1,1], index: 5, kind: input, shape index: {}]
  %s6 = inlined_call_operand.vmem [shape: f32[8,1], index: 6, kind: output, shape index: {}]
  %s7 = sld [smem:[#allocation0]]
  $region34: #{airmodel_forward.1} parent=0
    _
  %s9 = ssub.s32 1, %s7
  %s10 = scalar_select 0, %s9, %s7
  %v11 = vstv %s5
  %12 = vst [vmem:[#allocation2] sm:$0x1] %v11
  // Predicated region
  $region2: #{airmodel_forward.1} parent=0 // pred_check
    _
  $region3: #{airmodel_forward.1} parent=0 // pred_check_branch
    %14 = sbr.rel (0) target = $region5
  $region4: #{airmodel_forward.1} parent=0 // pred_region
    _
  $region5: #{airmodel_forward.1} parent=0 // pred_fallthru
    _
  // Predicated region
  $region6: #{airmodel_forward.1} parent=0 // pred_check
    _
  $region7: #{airmodel_forward.1} parent=0 // pred_check_branch
    %16 = sbr.rel (0) target = $region9
  $region8: #{airmodel_forward.1} parent=0 // pred_region
    _
  $region9: #{airmodel_forward.1} parent=0 // pred_fallthru
    _
  // Predicated region
  $region10: #{airmodel_forward.1} parent=0 // pred_check
    _
  $region11: #{airmodel_forward.1} parent=0 // pred_check_branch
    %18 = sbr.rel (0) target = $region13
  $region12: #{airmodel_forward.1} parent=0 // pred_region
    _
  $region13: #{airmodel_forward.1} parent=0 // pred_fallthru
    _
  // Predicated region
  $region14: #{airmodel_forward.1} parent=0 // pred_check
    _
  $region15: #{airmodel_forward.1} parent=0 // pred_check_branch
    %20 = sbr.rel (0) target = $region17
  $region16: #{airmodel_forward.1} parent=0 // pred_region
    _
  $region17: #{airmodel_forward.1} parent=0 // pred_fallthru
    _
  // Predicated region
  $region18: #{airmodel_forward.1} parent=0 // pred_check
    _
  $region19: #{airmodel_forward.1} parent=0 // pred_check_branch
    %22 = sbr.rel (0) target = $region21
  $region20: #{airmodel_forward.1} parent=0 // pred_region
    _
  $region21: #{airmodel_forward.1} parent=0 // pred_fallthru
    _
  // Predicated region
  $region22: #{airmodel_forward.1} parent=0 // pred_check
    _
  $region23: #{airmodel_forward.1} parent=0 // pred_check_branch
    %24 = sbr.rel (0) target = $region25
  $region24: #{airmodel_forward.1} parent=0 // pred_region
    _
  $region25: #{airmodel_forward.1} parent=0 // pred_fallthru
    _
  %v25 = vld [vmem:[%s0] sm:$0xff]
  %v26 = vld [vmem:[%s0 + $0x8] sm:$0xff]
  %v27 = vld [vmem:[%s0 + $0x10] sm:$0xff]
  %v28 = vld [vmem:[%s0 + $0x18] sm:$0xff]
  %v29 = vld [vmem:[%s0 + $0x20] sm:$0xff]
  %v30 = vld [vmem:[%s0 + $0x28] sm:$0xff]
  %v31 = vld [vmem:[%s0 + $0x30] sm:$0xff]
  %v32 = vld [vmem:[%s0 + $0x38] sm:$0xff]
  %v33 = vld [vmem:[%s1] sm:$0xf]
  %v34 = vld [vmem:[%s3] sm:$0x1]
  %v36 = vlaneseq
  %v37 = vshrl.u32 %v36, 7
  %v38 = vsub.s32 0, %v37
  %v39 = vrot.slane %v34, %v38
  %vm41 = vcmask 31744
  %v43 = vsel %vm41, %v25, 0
  %v46 = vsel %vm41, %v26, 0
  %v49 = vsel %vm41, %v27, 0
  %v52 = vsel %vm41, %v28, 0
  %v55 = vsel %vm41, %v29, 0
  %v58 = vsel %vm41, %v30, 0
  %v61 = vsel %vm41, %v31, 0
  %v64 = vsel %vm41, %v32, 0
  %vm66 = vcmask 1043456
  %v68 = vsel %vm66, %v33, 0
  %70 = vmatprep.subr.mxu0 0.0
  %71 = vmatpush1.msra.mxu0 %v68
  %72 = vmatprep.subr.mxu0 0.0
  %73 = vmatpush1.msra.mxu0 0.0
  %74 = vmatprep.subr.mxu0 0.0
  %75 = vmatpush1.msra.mxu0 0.0
  %76 = vmatprep.subr.mxu0 0.0
  %77 = vmatpush1.msra.mxu0 0.0
  %78 = vmatprep.subr.mxu0 0.0
  %79 = vmatpush1.msra.mxu0 0.0
  %80 = vmatprep.subr.mxu0 0.0
  %81 = vmatpush1.msra.mxu0 0.0
  %82 = vmatprep.subr.mxu0 0.0
  %83 = vmatpush1.msra.mxu0 0.0
  %84 = vmatprep.subr.mxu0 0.0
  %85 = vmatpush1.msra.mxu0 0.0
  %86 = vmatprep.subr.mxu0 0.0
  %87 = vmatpush1.msra.mxu0 0.0
  %88 = vmatprep.subr.mxu0 0.0
  %89 = vmatpush1.msra.mxu0 0.0
  %90 = vmatprep.subr.mxu0 0.0
  %91 = vmatpush1.msra.mxu0 0.0
  %92 = vmatprep.subr.mxu0 0.0
  %93 = vmatpush1.msra.mxu0 0.0
  %94 = vmatprep.subr.mxu0 0.0
  %95 = vmatpush1.msra.mxu0 0.0
  %96 = vmatprep.subr.mxu0 0.0
  %97 = vmatpush1.msra.mxu0 0.0
  %98 = vmatprep.subr.mxu0 0.0
  %99 = vmatpush1.msra.mxu0 0.0
  %100 = vmatprep.subr.mxu0 0.0
  %101 = vmatpush1.msra.mxu0 0.0
  %102 = vmatprep.subr.mxu0 0.0
  %103 = vmatpush1.msra.mxu0 0.0
  %104 = vmatprep.subr.mxu0 0.0
  %105 = vmatpush1.msra.mxu0 0.0
  %106 = vmatprep.subr.mxu0 0.0
  %107 = vmatpush1.msra.mxu0 0.0
  %108 = vmatprep.subr.mxu0 0.0
  %109 = vmatpush1.msra.mxu0 0.0
  %110 = vmatprep.subr.mxu0 0.0
  %111 = vmatpush1.msra.mxu0 0.0
  %112 = vmatprep.subr.mxu0 0.0
  %113 = vmatpush1.msra.mxu0 0.0
  %114 = vmatprep.subr.mxu0 0.0
  %115 = vmatpush1.msra.mxu0 0.0
  %116 = vmatprep.subr.mxu0 0.0
  %117 = vmatpush1.msra.mxu0 0.0
  %118 = vmatprep.subr.mxu0 0.0
  %119 = vmatpush1.msra.mxu0 0.0
  %120 = vmatprep.subr.mxu0 0.0
  %121 = vmatpush1.msra.mxu0 0.0
  %122 = vmatprep.subr.mxu0 0.0
  %123 = vmatpush1.msra.mxu0 0.0
  %124 = vmatprep.subr.mxu0 0.0
  %125 = vmatpush1.msra.mxu0 0.0
  %126 = vmatprep.subr.mxu0 0.0
  %127 = vmatpush1.msra.mxu0 0.0
  %128 = vmatprep.subr.mxu0 0.0
  %129 = vmatpush1.msra.mxu0 0.0
  %130 = vmatprep.subr.mxu0 0.0
  %131 = vmatpush1.msra.mxu0 0.0
  %132 = vmatprep.subr.mxu0 0.0
  %133 = vmatpush1.msra.mxu0 0.0
  %134 = vmatprep.mubr.f32.mxu0 0.0
  %135 = vmatmul.mubr.f32.gmra.mrb[0].mxu0 %v43
  %v136 = vpop.f32.mrb[0].mxu0
  %v137 = vadd.f32 %v39, %v136
  %v138 = vpop.f32.mrb[0].mxu0
  %139 = vmatprep.mubr.f32.mxu0 0.0
  %140 = vmatmul.mubr.f32.gmra.mrb[0].mxu0 %v46
  %v141 = vpop.f32.mrb[0].mxu0
  %v142 = vadd.f32 %v39, %v141
  %v143 = vpop.f32.mrb[0].mxu0
  %144 = vmatprep.mubr.f32.mxu0 0.0
  %145 = vmatmul.mubr.f32.gmra.mrb[0].mxu0 %v49
  %v146 = vpop.f32.mrb[0].mxu0
  %v147 = vadd.f32 %v39, %v146
  %v148 = vpop.f32.mrb[0].mxu0
  %149 = vmatprep.mubr.f32.mxu0 0.0
  %150 = vmatmul.mubr.f32.gmra.mrb[0].mxu0 %v52
  %v151 = vpop.f32.mrb[0].mxu0
  %v152 = vadd.f32 %v39, %v151
  %v153 = vpop.f32.mrb[0].mxu0
  %154 = vmatprep.mubr.f32.mxu0 0.0
  %155 = vmatmul.mubr.f32.gmra.mrb[0].mxu0 %v55
  %v156 = vpop.f32.mrb[0].mxu0
  %v157 = vadd.f32 %v39, %v156
  %v158 = vpop.f32.mrb[0].mxu0
  %159 = vmatprep.mubr.f32.mxu0 0.0
  %160 = vmatmul.mubr.f32.gmra.mrb[0].mxu0 %v58
  %v161 = vpop.f32.mrb[0].mxu0
  %v162 = vadd.f32 %v39, %v161
  %v163 = vpop.f32.mrb[0].mxu0
  %164 = vmatprep.mubr.f32.mxu0 0.0
  %165 = vmatmul.mubr.f32.gmra.mrb[0].mxu0 %v61
  %v166 = vpop.f32.mrb[0].mxu0
  %v167 = vadd.f32 %v39, %v166
  %v168 = vpop.f32.mrb[0].mxu0
  %169 = vmatprep.mubr.f32.mxu0 0.0
  %170 = vmatmul.mubr.f32.gmra.mrb[0].mxu0 %v64
  %v171 = vpop.f32.mrb[0].mxu0
  %v172 = vadd.f32 %v39, %v171
  %v173 = vpop.f32.mrb[0].mxu0
  %174 = vdwg.mxu0
  %v175 = vld [vmem:[%s2] sm:$0xff]
  %v176 = vld [vmem:[%s2 + $0x8] sm:$0xff]
  %v177 = vld [vmem:[%s2 + $0x10] sm:$0xff]
  %v178 = vld [vmem:[%s2 + $0x18] sm:$0xff]
  %v179 = vlaneseq
  %v180 = vand.u32 %v179, 127
  %vm181 = vcmp.ge.s32.totalorder %v180, 64
  %vm182 = vcmp.lt.s32.totalorder %v180, 96
  %vm183 = vmand %vm181, %vm182
  %v184 = vsel %vm183, 1.0, 0.5
  %v185 = vsel %vm183, 0.0, 0.5
  %vm186 = vcmask 261120
  %v188 = vsel %vm186, 0.0, 0
  %190 = vmatprep.subr.mxu0 0.0
  %191 = vmatpush1.msra.mxu0 %v175
  %192 = vmatprep.subr.mxu0 0.0
  %193 = vmatpush1.msra.mxu0 %v176
  %194 = vmatprep.subr.mxu0 0.0
  %195 = vmatpush1.msra.mxu0 %v177
  %196 = vmatprep.subr.mxu0 0.0
  %197 = vmatpush1.msra.mxu0 %v178
  %198 = vmatprep.subr.mxu0 0.0
  %199 = vmatpush1.msra.mxu0 0.0
  %200 = vmatprep.subr.mxu0 0.0
  %201 = vmatpush1.msra.mxu0 0.0
  %202 = vmatprep.subr.mxu0 0.0
  %203 = vmatpush1.msra.mxu0 0.0
  %204 = vmatprep.subr.mxu0 0.0
  %205 = vmatpush1.msra.mxu0 0.0
  %206 = vmatprep.subr.mxu0 0.0
  %207 = vmatpush1.msra.mxu0 0.0
  %208 = vmatprep.subr.mxu0 0.0
  %209 = vmatpush1.msra.mxu0 0.0
  %210 = vmatprep.subr.mxu0 0.0
  %211 = vmatpush1.msra.mxu0 0.0
  %212 = vmatprep.subr.mxu0 0.0
  %213 = vmatpush1.msra.mxu0 0.0
  %214 = vmatprep.subr.mxu0 0.0
  %215 = vmatpush1.msra.mxu0 0.0
  %216 = vmatprep.subr.mxu0 0.0
  %217 = vmatpush1.msra.mxu0 0.0
  %218 = vmatprep.subr.mxu0 0.0
  %219 = vmatpush1.msra.mxu0 0.0
  %220 = vmatprep.subr.mxu0 0.0
  %221 = vmatpush1.msra.mxu0 0.0
  %222 = vmatprep.subr.mxu0 0.0
  %223 = vmatpush1.msra.mxu0 0.0
  %224 = vmatprep.subr.mxu0 0.0
  %225 = vmatpush1.msra.mxu0 0.0
  %226 = vmatprep.subr.mxu0 0.0
  %227 = vmatpush1.msra.mxu0 0.0
  %228 = vmatprep.subr.mxu0 0.0
  %229 = vmatpush1.msra.mxu0 0.0
  %230 = vmatprep.subr.mxu0 0.0
  %231 = vmatpush1.msra.mxu0 0.0
  %232 = vmatprep.subr.mxu0 0.0
  %233 = vmatpush1.msra.mxu0 0.0
  %234 = vmatprep.subr.mxu0 0.0
  %235 = vmatpush1.msra.mxu0 0.0
  %236 = vmatprep.subr.mxu0 0.0
  %237 = vmatpush1.msra.mxu0 0.0
  %238 = vmatprep.subr.mxu0 0.0
  %239 = vmatpush1.msra.mxu0 0.0
  %240 = vmatprep.subr.mxu0 0.0
  %241 = vmatpush1.msra.mxu0 0.0
  %242 = vmatprep.subr.mxu0 0.0
  %243 = vmatpush1.msra.mxu0 0.0
  %244 = vmatprep.subr.mxu0 0.0
  %245 = vmatpush1.msra.mxu0 0.0
  %246 = vmatprep.subr.mxu0 0.0
  %247 = vmatpush1.msra.mxu0 0.0
  %248 = vmatprep.subr.mxu0 0.0
  %249 = vmatpush1.msra.mxu0 0.0
  %250 = vmatprep.subr.mxu0 0.0
  %251 = vmatpush1.msra.mxu0 0.0
  %252 = vmatprep.subr.mxu0 0.0
  %253 = vmatpush1.msra.mxu0 0.0
  %254 = vmatprep.mubr.f32.mxu0 0.0
  %255 = vmatmul.mubr.f32.gmra.mrb[0].mxu0 %v188
  %v256 = vpop.f32.mrb[0].mxu0
  %v257 = vadd.f32 0.0, %v256
  %v258 = vpop.f32.mrb[0].mxu0
  %259 = vdwg.mxu0
  %v260 = vadd.f32 %v137, %v257
  %v261 = vmul.f32 %v260, %v184
  %v262 = vtanh.pop %v261
  %v263 = vmul.f32 %v262, %v184
  %v264 = vadd.f32 %v263, %v185
  %v265 = vmul.f32 %v264, 0.0
  %267 = vrot.lane.b32.xlu0 %v264, 64
  %v268 = vpop.permute.xlu0 %267
  %v270 = vmul.f32 %v264, %v268
  %272 = vrot.lane.b32.xlu0 %v270, 32
  %v273 = vpop.permute.xlu0 %272
  %v275 = vadd.f32 %v265, %v273
  %v276 = vtanh.pop %v275
  %278 = vrot.lane.b32.xlu0 %v276, 64
  %v279 = vpop.permute.xlu0 %278
  %v281 = vmul.f32 %v264, %v279
  %283 = vrot.lane.b32.xlu0 %v281, 32
  %v284 = vpop.permute.xlu0 %283
  %v285 = vsel %vm186, %v284, 0
  %287 = vmatprep.subr.mxu0 0.0
  %288 = vmatpush1.msra.mxu0 %v175
  %289 = vmatprep.subr.mxu0 0.0
  %290 = vmatpush1.msra.mxu0 %v176
  %291 = vmatprep.subr.mxu0 0.0
  %292 = vmatpush1.msra.mxu0 %v177
  %293 = vmatprep.subr.mxu0 0.0
  %294 = vmatpush1.msra.mxu0 %v178
  %295 = vmatprep.subr.mxu0 0.0
  %296 = vmatpush1.msra.mxu0 0.0
  %297 = vmatprep.subr.mxu0 0.0
  %298 = vmatpush1.msra.mxu0 0.0
  %299 = vmatprep.subr.mxu0 0.0
  %300 = vmatpush1.msra.mxu0 0.0
  %301 = vmatprep.subr.mxu0 0.0
  %302 = vmatpush1.msra.mxu0 0.0
  %303 = vmatprep.subr.mxu0 0.0
  %304 = vmatpush1.msra.mxu0 0.0
  %305 = vmatprep.subr.mxu0 0.0
  %306 = vmatpush1.msra.mxu0 0.0
  %307 = vmatprep.subr.mxu0 0.0
  %308 = vmatpush1.msra.mxu0 0.0
  %309 = vmatprep.subr.mxu0 0.0
  %310 = vmatpush1.msra.mxu0 0.0
  %311 = vmatprep.subr.mxu0 0.0
  %312 = vmatpush1.msra.mxu0 0.0
  %313 = vmatprep.subr.mxu0 0.0
  %314 = vmatpush1.msra.mxu0 0.0
  %315 = vmatprep.subr.mxu0 0.0
  %316 = vmatpush1.msra.mxu0 0.0
  %317 = vmatprep.subr.mxu0 0.0
  %318 = vmatpush1.msra.mxu0 0.0
  %319 = vmatprep.subr.mxu0 0.0
  %320 = vmatpush1.msra.mxu0 0.0
  %321 = vmatprep.subr.mxu0 0.0
  %322 = vmatpush1.msra.mxu0 0.0
  %323 = vmatprep.subr.mxu0 0.0
  %324 = vmatpush1.msra.mxu0 0.0
  %325 = vmatprep.subr.mxu0 0.0
  %326 = vmatpush1.msra.mxu0 0.0
  %327 = vmatprep.subr.mxu0 0.0
  %328 = vmatpush1.msra.mxu0 0.0
  %329 = vmatprep.subr.mxu0 0.0
  %330 = vmatpush1.msra.mxu0 0.0
  %331 = vmatprep.subr.mxu0 0.0
  %332 = vmatpush1.msra.mxu0 0.0
  %333 = vmatprep.subr.mxu0 0.0
  %334 = vmatpush1.msra.mxu0 0.0
  %335 = vmatprep.subr.mxu0 0.0
  %336 = vmatpush1.msra.mxu0 0.0
  %337 = vmatprep.subr.mxu0 0.0
  %338 = vmatpush1.msra.mxu0 0.0
  %339 = vmatprep.subr.mxu0 0.0
  %340 = vmatpush1.msra.mxu0 0.0
  %341 = vmatprep.subr.mxu0 0.0
  %342 = vmatpush1.msra.mxu0 0.0
  %343 = vmatprep.subr.mxu0 0.0
  %344 = vmatpush1.msra.mxu0 0.0
  %345 = vmatprep.subr.mxu0 0.0
  %346 = vmatpush1.msra.mxu0 0.0
  %347 = vmatprep.subr.mxu0 0.0
  %348 = vmatpush1.msra.mxu0 0.0
  %349 = vmatprep.subr.mxu0 0.0
  %350 = vmatpush1.msra.mxu0 0.0
  %351 = vmatprep.mubr.f32.mxu0 0.0
  %352 = vmatmul.mubr.f32.gmra.mrb[0].mxu0 %v285
  %v353 = vpop.f32.mrb[0].mxu0
  %v354 = vadd.f32 0.0, %v353
  %v355 = vpop.f32.mrb[0].mxu0
  %356 = vdwg.mxu0
  %v357 = vadd.f32 %v142, %v354
  %v358 = vmul.f32 %v357, %v184
  %v359 = vtanh.pop %v358
  %v360 = vmul.f32 %v359, %v184
  %v361 = vadd.f32 %v360, %v185
  %v362 = vmul.f32 %v361, %v275
  %364 = vrot.lane.b32.xlu0 %v361, 64
  %v365 = vpop.permute.xlu0 %364
  %v367 = vmul.f32 %v361, %v365
  %369 = vrot.lane.b32.xlu0 %v367, 32
  %v370 = vpop.permute.xlu0 %369
  %v372 = vadd.f32 %v362, %v370
  %v373 = vtanh.pop %v372
  %375 = vrot.lane.b32.xlu0 %v373, 64
  %v376 = vpop.permute.xlu0 %375
  %v378 = vmul.f32 %v361, %v376
  %380 = vrot.lane.b32.xlu0 %v378, 32
  %v381 = vpop.permute.xlu0 %380
  %v382 = vsel %vm186, %v381, 0
  %384 = vmatprep.subr.mxu0 0.0
  %385 = vmatpush1.msra.mxu0 %v175
  %386 = vmatprep.subr.mxu0 0.0
  %387 = vmatpush1.msra.mxu0 %v176
  %388 = vmatprep.subr.mxu0 0.0
  %389 = vmatpush1.msra.mxu0 %v177
  %390 = vmatprep.subr.mxu0 0.0
  %391 = vmatpush1.msra.mxu0 %v178
  %392 = vmatprep.subr.mxu0 0.0
  %393 = vmatpush1.msra.mxu0 0.0
  %394 = vmatprep.subr.mxu0 0.0
  %395 = vmatpush1.msra.mxu0 0.0
  %396 = vmatprep.subr.mxu0 0.0
  %397 = vmatpush1.msra.mxu0 0.0
  %398 = vmatprep.subr.mxu0 0.0
  %399 = vmatpush1.msra.mxu0 0.0
  %400 = vmatprep.subr.mxu0 0.0
  %401 = vmatpush1.msra.mxu0 0.0
  %402 = vmatprep.subr.mxu0 0.0
  %403 = vmatpush1.msra.mxu0 0.0
  %404 = vmatprep.subr.mxu0 0.0
  %405 = vmatpush1.msra.mxu0 0.0
  %406 = vmatprep.subr.mxu0 0.0
  %407 = vmatpush1.msra.mxu0 0.0
  %408 = vmatprep.subr.mxu0 0.0
  %409 = vmatpush1.msra.mxu0 0.0
  %410 = vmatprep.subr.mxu0 0.0
  %411 = vmatpush1.msra.mxu0 0.0
  %412 = vmatprep.subr.mxu0 0.0
  %413 = vmatpush1.msra.mxu0 0.0
  %414 = vmatprep.subr.mxu0 0.0
  %415 = vmatpush1.msra.mxu0 0.0
  %416 = vmatprep.subr.mxu0 0.0
  %417 = vmatpush1.msra.mxu0 0.0
  %418 = vmatprep.subr.mxu0 0.0
  %419 = vmatpush1.msra.mxu0 0.0
  %420 = vmatprep.subr.mxu0 0.0
  %421 = vmatpush1.msra.mxu0 0.0
  %422 = vmatprep.subr.mxu0 0.0
  %423 = vmatpush1.msra.mxu0 0.0
  %424 = vmatprep.subr.mxu0 0.0
  %425 = vmatpush1.msra.mxu0 0.0
  %426 = vmatprep.subr.mxu0 0.0
  %427 = vmatpush1.msra.mxu0 0.0
  %428 = vmatprep.subr.mxu0 0.0
  %429 = vmatpush1.msra.mxu0 0.0
  %430 = vmatprep.subr.mxu0 0.0
  %431 = vmatpush1.msra.mxu0 0.0
  %432 = vmatprep.subr.mxu0 0.0
  %433 = vmatpush1.msra.mxu0 0.0
  %434 = vmatprep.subr.mxu0 0.0
  %435 = vmatpush1.msra.mxu0 0.0
  %436 = vmatprep.subr.mxu0 0.0
  %437 = vmatpush1.msra.mxu0 0.0
  %438 = vmatprep.subr.mxu0 0.0
  %439 = vmatpush1.msra.mxu0 0.0
  %440 = vmatprep.subr.mxu0 0.0
  %441 = vmatpush1.msra.mxu0 0.0
  %442 = vmatprep.subr.mxu0 0.0
  %443 = vmatpush1.msra.mxu0 0.0
  %444 = vmatprep.subr.mxu0 0.0
  %445 = vmatpush1.msra.mxu0 0.0
  %446 = vmatprep.subr.mxu0 0.0
  %447 = vmatpush1.msra.mxu0 0.0
  %448 = vmatprep.mubr.f32.mxu0 0.0
  %449 = vmatmul.mubr.f32.gmra.mrb[0].mxu0 %v382
  %v450 = vpop.f32.mrb[0].mxu0
  %v451 = vadd.f32 0.0, %v450
  %v452 = vpop.f32.mrb[0].mxu0
  %453 = vdwg.mxu0
  %v454 = vadd.f32 %v147, %v451
  %v455 = vmul.f32 %v454, %v184
  %v456 = vtanh.pop %v455
  %v457 = vmul.f32 %v456, %v184
  %v458 = vadd.f32 %v457, %v185
  %v459 = vmul.f32 %v458, %v372
  %461 = vrot.lane.b32.xlu0 %v458, 64
  %v462 = vpop.permute.xlu0 %461
  %v464 = vmul.f32 %v458, %v462
  %466 = vrot.lane.b32.xlu0 %v464, 32
  %v467 = vpop.permute.xlu0 %466
  %v469 = vadd.f32 %v459, %v467
  %v470 = vtanh.pop %v469
  %472 = vrot.lane.b32.xlu0 %v470, 64
  %v473 = vpop.permute.xlu0 %472
  %v475 = vmul.f32 %v458, %v473
  %477 = vrot.lane.b32.xlu0 %v475, 32
  %v478 = vpop.permute.xlu0 %477
  %v479 = vsel %vm186, %v478, 0
  %481 = vmatprep.subr.mxu0 0.0
  %482 = vmatpush1.msra.mxu0 %v175
  %483 = vmatprep.subr.mxu0 0.0
  %484 = vmatpush1.msra.mxu0 %v176
  %485 = vmatprep.subr.mxu0 0.0
  %486 = vmatpush1.msra.mxu0 %v177
  %487 = vmatprep.subr.mxu0 0.0
  %488 = vmatpush1.msra.mxu0 %v178
  %489 = vmatprep.subr.mxu0 0.0
  %490 = vmatpush1.msra.mxu0 0.0
  %491 = vmatprep.subr.mxu0 0.0
  %492 = vmatpush1.msra.mxu0 0.0
  %493 = vmatprep.subr.mxu0 0.0
  %494 = vmatpush1.msra.mxu0 0.0
  %495 = vmatprep.subr.mxu0 0.0
  %496 = vmatpush1.msra.mxu0 0.0
  %497 = vmatprep.subr.mxu0 0.0
  %498 = vmatpush1.msra.mxu0 0.0
  %499 = vmatprep.subr.mxu0 0.0
  %500 = vmatpush1.msra.mxu0 0.0
  %501 = vmatprep.subr.mxu0 0.0
  %502 = vmatpush1.msra.mxu0 0.0
  %503 = vmatprep.subr.mxu0 0.0
  %504 = vmatpush1.msra.mxu0 0.0
  %505 = vmatprep.subr.mxu0 0.0
  %506 = vmatpush1.msra.mxu0 0.0
  %507 = vmatprep.subr.mxu0 0.0
  %508 = vmatpush1.msra.mxu0 0.0
  %509 = vmatprep.subr.mxu0 0.0
  %510 = vmatpush1.msra.mxu0 0.0
  %511 = vmatprep.subr.mxu0 0.0
  %512 = vmatpush1.msra.mxu0 0.0
  %513 = vmatprep.subr.mxu0 0.0
  %514 = vmatpush1.msra.mxu0 0.0
  %515 = vmatprep.subr.mxu0 0.0
  %516 = vmatpush1.msra.mxu0 0.0
  %517 = vmatprep.subr.mxu0 0.0
  %518 = vmatpush1.msra.mxu0 0.0
  %519 = vmatprep.subr.mxu0 0.0
  %520 = vmatpush1.msra.mxu0 0.0
  %521 = vmatprep.subr.mxu0 0.0
  %522 = vmatpush1.msra.mxu0 0.0
  %523 = vmatprep.subr.mxu0 0.0
  %524 = vmatpush1.msra.mxu0 0.0
  %525 = vmatprep.subr.mxu0 0.0
  %526 = vmatpush1.msra.mxu0 0.0
  %527 = vmatprep.subr.mxu0 0.0
  %528 = vmatpush1.msra.mxu0 0.0
  %529 = vmatprep.subr.mxu0 0.0
  %530 = vmatpush1.msra.mxu0 0.0
  %531 = vmatprep.subr.mxu0 0.0
  %532 = vmatpush1.msra.mxu0 0.0
  %533 = vmatprep.subr.mxu0 0.0
  %534 = vmatpush1.msra.mxu0 0.0
  %535 = vmatprep.subr.mxu0 0.0
  %536 = vmatpush1.msra.mxu0 0.0
  %537 = vmatprep.subr.mxu0 0.0
  %538 = vmatpush1.msra.mxu0 0.0
  %539 = vmatprep.subr.mxu0 0.0
  %540 = vmatpush1.msra.mxu0 0.0
  %541 = vmatprep.subr.mxu0 0.0
  %542 = vmatpush1.msra.mxu0 0.0
  %543 = vmatprep.subr.mxu0 0.0
  %544 = vmatpush1.msra.mxu0 0.0
  %545 = vmatprep.mubr.f32.mxu0 0.0
  %546 = vmatmul.mubr.f32.gmra.mrb[0].mxu0 %v479
  %v547 = vpop.f32.mrb[0].mxu0
  %v548 = vadd.f32 0.0, %v547
  %v549 = vpop.f32.mrb[0].mxu0
  %550 = vdwg.mxu0
  %v551 = vadd.f32 %v152, %v548
  %v552 = vmul.f32 %v551, %v184
  %v553 = vtanh.pop %v552
  %v554 = vmul.f32 %v553, %v184
  %v555 = vadd.f32 %v554, %v185
  %v556 = vmul.f32 %v555, %v469
  %558 = vrot.lane.b32.xlu0 %v555, 64
  %v559 = vpop.permute.xlu0 %558
  %v561 = vmul.f32 %v555, %v559
  %563 = vrot.lane.b32.xlu0 %v561, 32
  %v564 = vpop.permute.xlu0 %563
  %v566 = vadd.f32 %v556, %v564
  %v567 = vtanh.pop %v566
  %569 = vrot.lane.b32.xlu0 %v567, 64
  %v570 = vpop.permute.xlu0 %569
  %v572 = vmul.f32 %v555, %v570
  %574 = vrot.lane.b32.xlu0 %v572, 32
  %v575 = vpop.permute.xlu0 %574
  %v576 = vsel %vm186, %v575, 0
  %578 = vmatprep.subr.mxu0 0.0
  %579 = vmatpush1.msra.mxu0 %v175
  %580 = vmatprep.subr.mxu0 0.0
  %581 = vmatpush1.msra.mxu0 %v176
  %582 = vmatprep.subr.mxu0 0.0
  %583 = vmatpush1.msra.mxu0 %v177
  %584 = vmatprep.subr.mxu0 0.0
  %585 = vmatpush1.msra.mxu0 %v178
  %586 = vmatprep.subr.mxu0 0.0
  %587 = vmatpush1.msra.mxu0 0.0
  %588 = vmatprep.subr.mxu0 0.0
  %589 = vmatpush1.msra.mxu0 0.0
  %590 = vmatprep.subr.mxu0 0.0
  %591 = vmatpush1.msra.mxu0 0.0
  %592 = vmatprep.subr.mxu0 0.0
  %593 = vmatpush1.msra.mxu0 0.0
  %594 = vmatprep.subr.mxu0 0.0
  %595 = vmatpush1.msra.mxu0 0.0
  %596 = vmatprep.subr.mxu0 0.0
  %597 = vmatpush1.msra.mxu0 0.0
  %598 = vmatprep.subr.mxu0 0.0
  %599 = vmatpush1.msra.mxu0 0.0
  %600 = vmatprep.subr.mxu0 0.0
  %601 = vmatpush1.msra.mxu0 0.0
  %602 = vmatprep.subr.mxu0 0.0
  %603 = vmatpush1.msra.mxu0 0.0
  %604 = vmatprep.subr.mxu0 0.0
  %605 = vmatpush1.msra.mxu0 0.0
  %606 = vmatprep.subr.mxu0 0.0
  %607 = vmatpush1.msra.mxu0 0.0
  %608 = vmatprep.subr.mxu0 0.0
  %609 = vmatpush1.msra.mxu0 0.0
  %610 = vmatprep.subr.mxu0 0.0
  %611 = vmatpush1.msra.mxu0 0.0
  %612 = vmatprep.subr.mxu0 0.0
  %613 = vmatpush1.msra.mxu0 0.0
  %614 = vmatprep.subr.mxu0 0.0
  %615 = vmatpush1.msra.mxu0 0.0
  %616 = vmatprep.subr.mxu0 0.0
  %617 = vmatpush1.msra.mxu0 0.0
  %618 = vmatprep.subr.mxu0 0.0
  %619 = vmatpush1.msra.mxu0 0.0
  %620 = vmatprep.subr.mxu0 0.0
  %621 = vmatpush1.msra.mxu0 0.0
  %622 = vmatprep.subr.mxu0 0.0
  %623 = vmatpush1.msra.mxu0 0.0
  %624 = vmatprep.subr.mxu0 0.0
  %625 = vmatpush1.msra.mxu0 0.0
  %626 = vmatprep.subr.mxu0 0.0
  %627 = vmatpush1.msra.mxu0 0.0
  %628 = vmatprep.subr.mxu0 0.0
  %629 = vmatpush1.msra.mxu0 0.0
  %630 = vmatprep.subr.mxu0 0.0
  %631 = vmatpush1.msra.mxu0 0.0
  %632 = vmatprep.subr.mxu0 0.0
  %633 = vmatpush1.msra.mxu0 0.0
  %634 = vmatprep.subr.mxu0 0.0
  %635 = vmatpush1.msra.mxu0 0.0
  %636 = vmatprep.subr.mxu0 0.0
  %637 = vmatpush1.msra.mxu0 0.0
  %638 = vmatprep.subr.mxu0 0.0
  %639 = vmatpush1.msra.mxu0 0.0
  %640 = vmatprep.subr.mxu0 0.0
  %641 = vmatpush1.msra.mxu0 0.0
  %642 = vmatprep.mubr.f32.mxu0 0.0
  %643 = vmatmul.mubr.f32.gmra.mrb[0].mxu0 %v576
  %v644 = vpop.f32.mrb[0].mxu0
  %v645 = vadd.f32 0.0, %v644
  %v646 = vpop.f32.mrb[0].mxu0
  %647 = vdwg.mxu0
  %v648 = vadd.f32 %v157, %v645
  %v649 = vmul.f32 %v648, %v184
  %v650 = vtanh.pop %v649
  %v651 = vmul.f32 %v650, %v184
  %v652 = vadd.f32 %v651, %v185
  %v653 = vmul.f32 %v652, %v566
  %655 = vrot.lane.b32.xlu0 %v652, 64
  %v656 = vpop.permute.xlu0 %655
  %v658 = vmul.f32 %v652, %v656
  %660 = vrot.lane.b32.xlu0 %v658, 32
  %v661 = vpop.permute.xlu0 %660
  %v663 = vadd.f32 %v653, %v661
  %v664 = vtanh.pop %v663
  %666 = vrot.lane.b32.xlu0 %v664, 64
  %v667 = vpop.permute.xlu0 %666
  %v669 = vmul.f32 %v652, %v667
  %671 = vrot.lane.b32.xlu0 %v669, 32
  %v672 = vpop.permute.xlu0 %671
  %v673 = vsel %vm186, %v672, 0
  %675 = vmatprep.subr.mxu0 0.0
  %676 = vmatpush1.msra.mxu0 %v175
  %677 = vmatprep.subr.mxu0 0.0
  %678 = vmatpush1.msra.mxu0 %v176
  %679 = vmatprep.subr.mxu0 0.0
  %680 = vmatpush1.msra.mxu0 %v177
  %681 = vmatprep.subr.mxu0 0.0
  %682 = vmatpush1.msra.mxu0 %v178
  %683 = vmatprep.subr.mxu0 0.0
  %684 = vmatpush1.msra.mxu0 0.0
  %685 = vmatprep.subr.mxu0 0.0
  %686 = vmatpush1.msra.mxu0 0.0
  %687 = vmatprep.subr.mxu0 0.0
  %688 = vmatpush1.msra.mxu0 0.0
  %689 = vmatprep.subr.mxu0 0.0
  %690 = vmatpush1.msra.mxu0 0.0
  %691 = vmatprep.subr.mxu0 0.0
  %692 = vmatpush1.msra.mxu0 0.0
  %693 = vmatprep.subr.mxu0 0.0
  %694 = vmatpush1.msra.mxu0 0.0
  %695 = vmatprep.subr.mxu0 0.0
  %696 = vmatpush1.msra.mxu0 0.0
  %697 = vmatprep.subr.mxu0 0.0
  %698 = vmatpush1.msra.mxu0 0.0
  %699 = vmatprep.subr.mxu0 0.0
  %700 = vmatpush1.msra.mxu0 0.0
  %701 = vmatprep.subr.mxu0 0.0
  %702 = vmatpush1.msra.mxu0 0.0
  %703 = vmatprep.subr.mxu0 0.0
  %704 = vmatpush1.msra.mxu0 0.0
  %705 = vmatprep.subr.mxu0 0.0
  %706 = vmatpush1.msra.mxu0 0.0
  %707 = vmatprep.subr.mxu0 0.0
  %708 = vmatpush1.msra.mxu0 0.0
  %709 = vmatprep.subr.mxu0 0.0
  %710 = vmatpush1.msra.mxu0 0.0
  %711 = vmatprep.subr.mxu0 0.0
  %712 = vmatpush1.msra.mxu0 0.0
  %713 = vmatprep.subr.mxu0 0.0
  %714 = vmatpush1.msra.mxu0 0.0
  %715 = vmatprep.subr.mxu0 0.0
  %716 = vmatpush1.msra.mxu0 0.0
  %717 = vmatprep.subr.mxu0 0.0
  %718 = vmatpush1.msra.mxu0 0.0
  %719 = vmatprep.subr.mxu0 0.0
  %720 = vmatpush1.msra.mxu0 0.0
  %721 = vmatprep.subr.mxu0 0.0
  %722 = vmatpush1.msra.mxu0 0.0
  %723 = vmatprep.subr.mxu0 0.0
  %724 = vmatpush1.msra.mxu0 0.0
  %725 = vmatprep.subr.mxu0 0.0
  %726 = vmatpush1.msra.mxu0 0.0
  %727 = vmatprep.subr.mxu0 0.0
  %728 = vmatpush1.msra.mxu0 0.0
  %729 = vmatprep.subr.mxu0 0.0
  %730 = vmatpush1.msra.mxu0 0.0
  %731 = vmatprep.subr.mxu0 0.0
  %732 = vmatpush1.msra.mxu0 0.0
  %733 = vmatprep.subr.mxu0 0.0
  %734 = vmatpush1.msra.mxu0 0.0
  %735 = vmatprep.subr.mxu0 0.0
  %736 = vmatpush1.msra.mxu0 0.0
  %737 = vmatprep.subr.mxu0 0.0
  %738 = vmatpush1.msra.mxu0 0.0
  %739 = vmatprep.mubr.f32.mxu0 0.0
  %740 = vmatmul.mubr.f32.gmra.mrb[0].mxu0 %v673
  %v741 = vpop.f32.mrb[0].mxu0
  %v742 = vadd.f32 0.0, %v741
  %v743 = vpop.f32.mrb[0].mxu0
  %744 = vdwg.mxu0
  %v745 = vadd.f32 %v162, %v742
  %v746 = vmul.f32 %v745, %v184
  %v747 = vtanh.pop %v746
  %v748 = vmul.f32 %v747, %v184
  %v749 = vadd.f32 %v748, %v185
  %v750 = vmul.f32 %v749, %v663
  %752 = vrot.lane.b32.xlu0 %v749, 64
  %v753 = vpop.permute.xlu0 %752
  %v755 = vmul.f32 %v749, %v753
  %757 = vrot.lane.b32.xlu0 %v755, 32
  %v758 = vpop.permute.xlu0 %757
  %v760 = vadd.f32 %v750, %v758
  %v761 = vtanh.pop %v760
  %763 = vrot.lane.b32.xlu0 %v761, 64
  %v764 = vpop.permute.xlu0 %763
  %v766 = vmul.f32 %v749, %v764
  %768 = vrot.lane.b32.xlu0 %v766, 32
  %v769 = vpop.permute.xlu0 %768
  %v770 = vsel %vm186, %v769, 0
  %772 = vmatprep.subr.mxu0 0.0
  %773 = vmatpush1.msra.mxu0 %v175
  %774 = vmatprep.subr.mxu0 0.0
  %775 = vmatpush1.msra.mxu0 %v176
  %776 = vmatprep.subr.mxu0 0.0
  %777 = vmatpush1.msra.mxu0 %v177
  %778 = vmatprep.subr.mxu0 0.0
  %779 = vmatpush1.msra.mxu0 %v178
  %780 = vmatprep.subr.mxu0 0.0
  %781 = vmatpush1.msra.mxu0 0.0
  %782 = vmatprep.subr.mxu0 0.0
  %783 = vmatpush1.msra.mxu0 0.0
  %784 = vmatprep.subr.mxu0 0.0
  %785 = vmatpush1.msra.mxu0 0.0
  %786 = vmatprep.subr.mxu0 0.0
  %787 = vmatpush1.msra.mxu0 0.0
  %788 = vmatprep.subr.mxu0 0.0
  %789 = vmatpush1.msra.mxu0 0.0
  %790 = vmatprep.subr.mxu0 0.0
  %791 = vmatpush1.msra.mxu0 0.0
  %792 = vmatprep.subr.mxu0 0.0
  %793 = vmatpush1.msra.mxu0 0.0
  %794 = vmatprep.subr.mxu0 0.0
  %795 = vmatpush1.msra.mxu0 0.0
  %796 = vmatprep.subr.mxu0 0.0
  %797 = vmatpush1.msra.mxu0 0.0
  %798 = vmatprep.subr.mxu0 0.0
  %799 = vmatpush1.msra.mxu0 0.0
  %800 = vmatprep.subr.mxu0 0.0
  %801 = vmatpush1.msra.mxu0 0.0
  %802 = vmatprep.subr.mxu0 0.0
  %803 = vmatpush1.msra.mxu0 0.0
  %804 = vmatprep.subr.mxu0 0.0
  %805 = vmatpush1.msra.mxu0 0.0
  %806 = vmatprep.subr.mxu0 0.0
  %807 = vmatpush1.msra.mxu0 0.0
  %808 = vmatprep.subr.mxu0 0.0
  %809 = vmatpush1.msra.mxu0 0.0
  %810 = vmatprep.subr.mxu0 0.0
  %811 = vmatpush1.msra.mxu0 0.0
  %812 = vmatprep.subr.mxu0 0.0
  %813 = vmatpush1.msra.mxu0 0.0
  %814 = vmatprep.subr.mxu0 0.0
  %815 = vmatpush1.msra.mxu0 0.0
  %816 = vmatprep.subr.mxu0 0.0
  %817 = vmatpush1.msra.mxu0 0.0
  %818 = vmatprep.subr.mxu0 0.0
  %819 = vmatpush1.msra.mxu0 0.0
  %820 = vmatprep.subr.mxu0 0.0
  %821 = vmatpush1.msra.mxu0 0.0
  %822 = vmatprep.subr.mxu0 0.0
  %823 = vmatpush1.msra.mxu0 0.0
  %824 = vmatprep.subr.mxu0 0.0
  %825 = vmatpush1.msra.mxu0 0.0
  %826 = vmatprep.subr.mxu0 0.0
  %827 = vmatpush1.msra.mxu0 0.0
  %828 = vmatprep.subr.mxu0 0.0
  %829 = vmatpush1.msra.mxu0 0.0
  %830 = vmatprep.subr.mxu0 0.0
  %831 = vmatpush1.msra.mxu0 0.0
  %832 = vmatprep.subr.mxu0 0.0
  %833 = vmatpush1.msra.mxu0 0.0
  %834 = vmatprep.subr.mxu0 0.0
  %835 = vmatpush1.msra.mxu0 0.0
  %836 = vmatprep.mubr.f32.mxu0 0.0
  %837 = vmatmul.mubr.f32.gmra.mrb[0].mxu0 %v770
  %v838 = vpop.f32.mrb[0].mxu0
  %v839 = vadd.f32 0.0, %v838
  %v840 = vpop.f32.mrb[0].mxu0
  %841 = vdwg.mxu0
  %v842 = vadd.f32 %v167, %v839
  %v843 = vmul.f32 %v842, %v184
  %v844 = vtanh.pop %v843
  %v845 = vmul.f32 %v844, %v184
  %v846 = vadd.f32 %v845, %v185
  %v847 = vmul.f32 %v846, %v760
  %849 = vrot.lane.b32.xlu0 %v846, 64
  %v850 = vpop.permute.xlu0 %849
  %v852 = vmul.f32 %v846, %v850
  %854 = vrot.lane.b32.xlu0 %v852, 32
  %v855 = vpop.permute.xlu0 %854
  %v857 = vadd.f32 %v847, %v855
  %v858 = vtanh.pop %v857
  %860 = vrot.lane.b32.xlu0 %v858, 64
  %v861 = vpop.permute.xlu0 %860
  %v863 = vmul.f32 %v846, %v861
  %865 = vrot.lane.b32.xlu0 %v863, 32
  %v866 = vpop.permute.xlu0 %865
  %v867 = vsel %vm186, %v866, 0
  %869 = vmatprep.subr.mxu0 0.0
  %870 = vmatpush1.msra.mxu0 %v175
  %871 = vmatprep.subr.mxu0 0.0
  %872 = vmatpush1.msra.mxu0 %v176
  %873 = vmatprep.subr.mxu0 0.0
  %874 = vmatpush1.msra.mxu0 %v177
  %875 = vmatprep.subr.mxu0 0.0
  %876 = vmatpush1.msra.mxu0 %v178
  %877 = vmatprep.subr.mxu0 0.0
  %878 = vmatpush1.msra.mxu0 0.0
  %879 = vmatprep.subr.mxu0 0.0
  %880 = vmatpush1.msra.mxu0 0.0
  %881 = vmatprep.subr.mxu0 0.0
  %882 = vmatpush1.msra.mxu0 0.0
  %883 = vmatprep.subr.mxu0 0.0
  %884 = vmatpush1.msra.mxu0 0.0
  %885 = vmatprep.subr.mxu0 0.0
  %886 = vmatpush1.msra.mxu0 0.0
  %887 = vmatprep.subr.mxu0 0.0
  %888 = vmatpush1.msra.mxu0 0.0
  %889 = vmatprep.subr.mxu0 0.0
  %890 = vmatpush1.msra.mxu0 0.0
  %891 = vmatprep.subr.mxu0 0.0
  %892 = vmatpush1.msra.mxu0 0.0
  %893 = vmatprep.subr.mxu0 0.0
  %894 = vmatpush1.msra.mxu0 0.0
  %895 = vmatprep.subr.mxu0 0.0
  %896 = vmatpush1.msra.mxu0 0.0
  %897 = vmatprep.subr.mxu0 0.0
  %898 = vmatpush1.msra.mxu0 0.0
  %899 = vmatprep.subr.mxu0 0.0
  %900 = vmatpush1.msra.mxu0 0.0
  %901 = vmatprep.subr.mxu0 0.0
  %902 = vmatpush1.msra.mxu0 0.0
  %903 = vmatprep.subr.mxu0 0.0
  %904 = vmatpush1.msra.mxu0 0.0
  %905 = vmatprep.subr.mxu0 0.0
  %906 = vmatpush1.msra.mxu0 0.0
  %907 = vmatprep.subr.mxu0 0.0
  %908 = vmatpush1.msra.mxu0 0.0
  %909 = vmatprep.subr.mxu0 0.0
  %910 = vmatpush1.msra.mxu0 0.0
  %911 = vmatprep.subr.mxu0 0.0
  %912 = vmatpush1.msra.mxu0 0.0
  %913 = vmatprep.subr.mxu0 0.0
  %914 = vmatpush1.msra.mxu0 0.0
  %915 = vmatprep.subr.mxu0 0.0
  %916 = vmatpush1.msra.mxu0 0.0
  %917 = vmatprep.subr.mxu0 0.0
  %918 = vmatpush1.msra.mxu0 0.0
  %919 = vmatprep.subr.mxu0 0.0
  %920 = vmatpush1.msra.mxu0 0.0
  %921 = vmatprep.subr.mxu0 0.0
  %922 = vmatpush1.msra.mxu0 0.0
  %923 = vmatprep.subr.mxu0 0.0
  %924 = vmatpush1.msra.mxu0 0.0
  %925 = vmatprep.subr.mxu0 0.0
  %926 = vmatpush1.msra.mxu0 0.0
  %927 = vmatprep.subr.mxu0 0.0
  %928 = vmatpush1.msra.mxu0 0.0
  %929 = vmatprep.subr.mxu0 0.0
  %930 = vmatpush1.msra.mxu0 0.0
  %931 = vmatprep.subr.mxu0 0.0
  %932 = vmatpush1.msra.mxu0 0.0
  %933 = vmatprep.mubr.f32.mxu0 0.0
  %934 = vmatmul.mubr.f32.gmra.mrb[0].mxu0 %v867
  %v935 = vpop.f32.mrb[0].mxu0
  %v936 = vadd.f32 0.0, %v935
  %v937 = vpop.f32.mrb[0].mxu0
  %938 = vdwg.mxu0
  %v939 = vadd.f32 %v172, %v936
  %v940 = vmul.f32 %v939, %v184
  %v941 = vtanh.pop %v940
  %v942 = vmul.f32 %v941, %v184
  %v943 = vadd.f32 %v942, %v185
  %v944 = vmul.f32 %v943, %v857
  %946 = vrot.lane.b32.xlu0 %v943, 64
  %v947 = vpop.permute.xlu0 %946
  %v949 = vmul.f32 %v943, %v947
  %951 = vrot.lane.b32.xlu0 %v949, 32
  %v952 = vpop.permute.xlu0 %951
  %v954 = vadd.f32 %v944, %v952
  %v955 = vtanh.pop %v954
  %957 = vrot.lane.b32.xlu0 %v955, 64
  %v958 = vpop.permute.xlu0 %957
  %v960 = vmul.f32 %v943, %v958
  %v961 = vld [vmem:[%s4] sm:$0xff]
  %v962 = vld [vmem:[%s4 + $0x8] sm:$0xff]
  %v963 = vld [vmem:[%s4 + $0x10] sm:$0xff]
  %v964 = vld [vmem:[%s4 + $0x18] sm:$0xff]
  %v965 = vld [vmem:[#allocation2] sm:$0x1]
  %v967 = vlaneseq
  %v968 = vshrl.u32 %v967, 7
  %v969 = vsub.s32 0, %v968
  %v970 = vrot.slane %v965, %v969
  %973 = vrot.lane.b32.xlu0 %v960, 32
  %v974 = vpop.permute.xlu0 %973
  %v975 = vsel %vm186, %v974, 0
  %977 = vmatprep.subr.mxu0 0.0
  %978 = vmatpush1.msra.mxu0 %v961
  %979 = vmatprep.subr.mxu0 0.0
  %980 = vmatpush1.msra.mxu0 %v962
  %981 = vmatprep.subr.mxu0 0.0
  %982 = vmatpush1.msra.mxu0 %v963
  %983 = vmatprep.subr.mxu0 0.0
  %984 = vmatpush1.msra.mxu0 %v964
  %985 = vmatprep.subr.mxu0 0.0
  %986 = vmatpush1.msra.mxu0 0.0
  %987 = vmatprep.subr.mxu0 0.0
  %988 = vmatpush1.msra.mxu0 0.0
  %989 = vmatprep.subr.mxu0 0.0
  %990 = vmatpush1.msra.mxu0 0.0
  %991 = vmatprep.subr.mxu0 0.0
  %992 = vmatpush1.msra.mxu0 0.0
  %993 = vmatprep.subr.mxu0 0.0
  %994 = vmatpush1.msra.mxu0 0.0
  %995 = vmatprep.subr.mxu0 0.0
  %996 = vmatpush1.msra.mxu0 0.0
  %997 = vmatprep.subr.mxu0 0.0
  %998 = vmatpush1.msra.mxu0 0.0
  %999 = vmatprep.subr.mxu0 0.0
  %1000 = vmatpush1.msra.mxu0 0.0
  %1001 = vmatprep.subr.mxu0 0.0
  %1002 = vmatpush1.msra.mxu0 0.0
  %1003 = vmatprep.subr.mxu0 0.0
  %1004 = vmatpush1.msra.mxu0 0.0
  %1005 = vmatprep.subr.mxu0 0.0
  %1006 = vmatpush1.msra.mxu0 0.0
  %1007 = vmatprep.subr.mxu0 0.0
  %1008 = vmatpush1.msra.mxu0 0.0
  %1009 = vmatprep.subr.mxu0 0.0
  %1010 = vmatpush1.msra.mxu0 0.0
  %1011 = vmatprep.subr.mxu0 0.0
  %1012 = vmatpush1.msra.mxu0 0.0
  %1013 = vmatprep.subr.mxu0 0.0
  %1014 = vmatpush1.msra.mxu0 0.0
  %1015 = vmatprep.subr.mxu0 0.0
  %1016 = vmatpush1.msra.mxu0 0.0
  %1017 = vmatprep.subr.mxu0 0.0
  %1018 = vmatpush1.msra.mxu0 0.0
  %1019 = vmatprep.subr.mxu0 0.0
  %1020 = vmatpush1.msra.mxu0 0.0
  %1021 = vmatprep.subr.mxu0 0.0
  %1022 = vmatpush1.msra.mxu0 0.0
  %1023 = vmatprep.subr.mxu0 0.0
  %1024 = vmatpush1.msra.mxu0 0.0
  %1025 = vmatprep.subr.mxu0 0.0
  %1026 = vmatpush1.msra.mxu0 0.0
  %1027 = vmatprep.subr.mxu0 0.0
  %1028 = vmatpush1.msra.mxu0 0.0
  %1029 = vmatprep.subr.mxu0 0.0
  %1030 = vmatpush1.msra.mxu0 0.0
  %1031 = vmatprep.subr.mxu0 0.0
  %1032 = vmatpush1.msra.mxu0 0.0
  %1033 = vmatprep.subr.mxu0 0.0
  %1034 = vmatpush1.msra.mxu0 0.0
  %1035 = vmatprep.subr.mxu0 0.0
  %1036 = vmatpush1.msra.mxu0 0.0
  %1037 = vmatprep.subr.mxu0 0.0
  %1038 = vmatpush1.msra.mxu0 0.0
  %1039 = vmatprep.subr.mxu0 0.0
  %1040 = vmatpush1.msra.mxu0 0.0
  %1041 = vmatprep.mubr.f32.mxu0 0.0
  %1042 = vmatmul.mubr.f32.gmra.mrb[0].mxu0 %v975
  %v1043 = vpop.f32.mrb[0].mxu0
  %v1044 = vadd.f32 %v970, %v1043
  %v1045 = vpop.f32.mrb[0].mxu0
  %1046 = vdwg.mxu0
  %vm1047 = vcmask 7168
  %1048 = vst.msk [vmem:[%s6] sm:$0xff] %vm1047, %v1044
  // Predicated region
  $region26: #{airmodel_forward.1} parent=0 // pred_check
    _
  $region27: #{airmodel_forward.1} parent=0 // pred_check_branch
    %1050 = sbr.rel (0) target = $region29
  $region28: #{airmodel_forward.1} parent=0 // pred_region
    _
  $region29: #{airmodel_forward.1} parent=0 // pred_fallthru
    _
  // Predicated region
  $region30: #{airmodel_forward.1} parent=0 // pred_check
    _
  $region31: #{airmodel_forward.1} parent=0 // pred_check_branch
    %1052 = sbr.rel (0) target = $region33
  $region32: #{airmodel_forward.1} parent=0 // pred_region
    _
  $region33: #{airmodel_forward.1} parent=0 // pred_fallthru
    _

</llo_original>
